<compile_context>
chip_gen: v5e
topology: v5e:2x2
jax: 0.10.0
libtpu: 0.0.40
codegen_flags: <defaults>
</compile_context>

<pallas_src>
import functools

import jax
import jax.numpy as jnp
from jax.experimental import pallas as pl
from jax.experimental.pallas import tpu as pltpu

LANES = 128
SUBLANES = 8            # f32 sublane grain; accumulator tile rows
MAX_BLOCK_ROWS = 4096   # 2 MiB f32 / input block; multiple of 32 so it is a
                        # valid block row count for any input dtype grain.


def _sublane_grain(dtype) -> int:
    """Minimum second-to-last block dim for a dtype: 8 f32, 16 bf16, 32 int8."""
    return max(SUBLANES, 32 // jnp.dtype(dtype).itemsize)


def _round_up(n: int, m: int) -> int:
    return ((n + m - 1) // m) * m


def _bce_kernel(x_ref, y_ref, o_ref, acc_ref, *, total_rows, block_rows, ragged):
    p = pl.program_id(0)        # partial index ("parallel": TC split on v7x)
    s = pl.program_id(1)        # reduction step ("arbitrary")
    ns = pl.num_programs(1)

    @pl.when(s == 0)
    def _():
        acc_ref[...] = jnp.zeros_like(acc_ref)

    # Cast in-kernel; arithmetic stays f32 (v5e VPU/EUP have no bf16 paths).
    x = x_ref[...].astype(jnp.float32)
    y = y_ref[...].astype(jnp.float32)

    # Numerically-stable BCE-with-logits (PyTorch's stable formulation).
    loss = jnp.maximum(x, 0.0) - x * y + jnp.log1p(jnp.exp(-jnp.abs(x)))

    if ragged:
        # Only emitted when the grid statically has a ragged last block:
        # rows past the array end hold stale VMEM data and must be zeroed.
        blk = p * ns + s
        valid = total_rows - blk * block_rows
        rid = jax.lax.broadcasted_iota(jnp.int32, loss.shape, 0)
        loss = jnp.where(rid < valid, loss, 0.0)

    # Fold the block into one (8, 128) accumulator: tile-aligned reshape +
    # pure VPU vreg adds; no block-sized acc traffic per step.
    acc_ref[...] += loss.reshape(-1, SUBLANES, LANES).sum(axis=0)

    @pl.when(s == ns - 1)
    def _():
        # Single cross-lane/sublane reduction per partial, at the very end.
        o_ref[...] = jnp.sum(acc_ref[...]).reshape(1, 1, 1)


def bce_with_logits_loss(outputs, targets):
    """Scalar mean BCE-with-logits loss computed in a Pallas TPU kernel."""
    assert outputs.shape == targets.shape
    total = outputs.size

    # Keep native dtypes (do NOT upcast before the DMA): bf16 targets/logits
    # cut HBM read bytes; the f32 upcast happens inside the kernel.
    x = outputs.reshape(-1)
    y = targets.reshape(-1)
    grain = max(_sublane_grain(x.dtype), _sublane_grain(y.dtype))

    rows = pl.cdiv(total, LANES)
    if rows >= MAX_BLOCK_ROWS:
        # Large inputs: fixed big block, ragged last block masked in-kernel
        # (zero-copy whenever total is a multiple of 128).
        block_rows = MAX_BLOCK_ROWS
        padded_rows = rows
    else:
        # Small inputs: one block, rounded up to the dtype tiling grain.
        block_rows = _round_up(rows, grain)
        padded_rows = block_rows

    pad = padded_rows * LANES - total
    if pad:
        # Benign padding: x = -1e4 (finite), y = 0 gives exactly 0.0 loss in
        # f32, so no extra masking is needed for padded elements.
        # TODO(synk): non-128-aligned totals still pay one HBM copy here; a
        # fully ragged 1-D tail mask would remove it.
        x = jnp.pad(x, (0, pad), constant_values=-1e4)
        y = jnp.pad(y, (0, pad), constant_values=0)

    x2 = x.reshape(padded_rows, LANES)
    y2 = y.reshape(padded_rows, LANES)

    num_blocks = pl.cdiv(padded_rows, block_rows)
    ragged = (padded_rows % block_rows) != 0

    # Leading "parallel" axis: one partial per TensorCore on v7x (harmless,
    # near-zero cost on single-TC v5e/v6e).  Only used when it divides evenly.
    P = 2 if (num_blocks >= 2 and num_blocks % 2 == 0) else 1
    S = num_blocks // P

    cost = pl.CostEstimate(
        flops=6 * total,
        transcendentals=2 * total,  # exp + log1p per element
        bytes_accessed=(x2.size * x2.dtype.itemsize
                        + y2.size * y2.dtype.itemsize
                        + P * 4),
    )

    kernel = functools.partial(
        _bce_kernel, total_rows=padded_rows, block_rows=block_rows, ragged=ragged)

    partials = pl.pallas_call(
        kernel,
        out_shape=jax.ShapeDtypeStruct((P, 1, 1), jnp.float32),
        grid_spec=pltpu.PrefetchScalarGridSpec(
            num_scalar_prefetch=0,
            grid=(P, S),
            in_specs=[
                pl.BlockSpec((block_rows, LANES), lambda p, s: (p * S + s, 0)),
                pl.BlockSpec((block_rows, LANES), lambda p, s: (p * S + s, 0)),
            ],
            out_specs=pl.BlockSpec((1, 1, 1), lambda p, s: (p, 0, 0)),
            scratch_shapes=[pltpu.VMEM((SUBLANES, LANES), jnp.float32)],
        ),
        compiler_params=pltpu.CompilerParams(
            dimension_semantics=("parallel", "arbitrary"),
        ),
        cost_estimate=cost,
    )(x2, y2)

    # Mean: sum the (tiny) partials and divide once in the wrapper.
    return jnp.sum(partials) / jnp.float32(total)


def _reference(outputs, targets):
    x = outputs.astype(jnp.float32)
    y = targets.astype(jnp.float32)
    loss = jnp.maximum(x, 0.0) - x * y + jnp.log1p(jnp.exp(-jnp.abs(x)))
    return jnp.mean(loss)


if __name__ == "__main__":
    key = jax.random.PRNGKey(0)
    k1, k2, k3, k4 = jax.random.split(key, 4)

    # Primary check: NCHW-shaped logits and {0,1} targets (spec shape).
    shape = (2, 4, 16, 16)
    outputs = jax.random.normal(k1, shape, dtype=jnp.float32)
    targets = jax.random.bernoulli(k2, p=0.5, shape=shape).astype(jnp.float32)

    loss = bce_with_logits_loss(outputs, targets)
    jax.block_until_ready(loss)
    ref = _reference(outputs, targets)
    assert jnp.allclose(loss, ref, atol=1e-5, rtol=1e-5), (loss, ref)

    # bf16 targets (0/1 exact): exercises the dtype-grain path, 25% less DMA.
    loss_bf16 = bce_with_logits_loss(outputs, targets.astype(jnp.bfloat16))
    jax.block_until_ready(loss_bf16)
    assert jnp.allclose(loss_bf16, ref, atol=1e-5, rtol=1e-5), (loss_bf16, ref)

    # Non-128-aligned size: exercises the benign-padding fallback path.
    shape2 = (3, 5, 7, 11)
    o2 = jax.random.normal(k3, shape2, dtype=jnp.float32)
    t2 = jax.random.bernoulli(k4, p=0.5, shape=shape2).astype(jnp.float32)
    l2 = bce_with_logits_loss(o2, t2)
    jax.block_until_ready(l2)
    assert jnp.allclose(l2, _reference(o2, t2), atol=1e-5, rtol=1e-5)

    # Multi-block ragged path: exercises the in-kernel tail mask and the
    # leading "parallel" (2-TensorCore) axis.
    shape3 = (4100, 128)
    o3 = jax.random.normal(k3, shape3, dtype=jnp.float32)
    t3 = jax.random.bernoulli(k4, p=0.5, shape=shape3).astype(jnp.float32)
    l3 = bce_with_logits_loss(o3, t3)
    jax.block_until_ready(l3)
    assert jnp.allclose(l3, _reference(o3, t3), atol=1e-6, rtol=1e-4)

    print("KERNEL_OK")
</pallas_src>

<mosaic_0001>
module attributes {stable_mosaic.version = 11 : i64} {
  func.func @_bce_kernel(%arg0: i32, %arg1: i32, %arg2: memref<16x128xf32, #tpu.memory_space<vmem>>, %arg3: memref<16x128xf32, #tpu.memory_space<vmem>>, %arg4: memref<1x1x1xf32, #tpu.memory_space<vmem>>, %arg5: memref<8x128xf32, #tpu.memory_space<vmem>>) attributes {dimension_semantics = [#tpu.dimension_semantics<parallel>, #tpu.dimension_semantics<arbitrary>], iteration_bounds = array<i64: 1, 1>, scalar_prefetch = 0 : i64, scratch_operands = 1 : i64, tpu.core_type = #tpu.core_type<tc>, window_params = [{transform_indices = @transform_0, window_bounds = array<i64: 16, 128>}, {transform_indices = @transform_1, window_bounds = array<i64: 16, 128>}, {transform_indices = @transform_2, window_bounds = array<i64: 1, 1, 1>}]} {
    %c0_i32 = arith.constant 0 : i32
    %0 = arith.cmpi eq, %arg1, %c0_i32 : i32
    %1 = arith.extui %0 : i1 to i32
    %c0_i32_0 = arith.constant 0 : i32
    %2 = arith.cmpi ne, %1, %c0_i32_0 : i32
    scf.if %2 {
      %cst_12 = arith.constant 0.000000e+00 : f32
      %23 = vector.broadcast %cst_12 : f32 to vector<8x128xf32>
      %c0_13 = arith.constant 0 : index
      %c0_14 = arith.constant 0 : index
      %24 = vector.load %arg5[%c0_13, %c0_14] : memref<8x128xf32, #tpu.memory_space<vmem>>, vector<8x128xf32>
      tpu.vector_store %arg5[%c0_13, %c0_14], %23 {strides = array<i32>} : memref<8x128xf32, #tpu.memory_space<vmem>>, vector<8x128xf32>,
    } else {
    }
    %c0 = arith.constant 0 : index
    %c0_1 = arith.constant 0 : index
    %3 = vector.load %arg2[%c0, %c0_1] : memref<16x128xf32, #tpu.memory_space<vmem>>, vector<16x128xf32>
    %c0_2 = arith.constant 0 : index
    %c0_3 = arith.constant 0 : index
    %4 = vector.load %arg3[%c0_2, %c0_3] : memref<16x128xf32, #tpu.memory_space<vmem>>, vector<16x128xf32>
    %cst = arith.constant 0.000000e+00 : f32
    %5 = vector.broadcast %cst : f32 to vector<16x128xf32>
    %6 = arith.maximumf %3, %5 : vector<16x128xf32>
    %7 = arith.mulf %3, %4 : vector<16x128xf32>
    %8 = arith.subf %6, %7 : vector<16x128xf32>
    %9 = math.absf %3 : vector<16x128xf32>
    %cst_4 = arith.constant 0.000000e+00 : f32
    %10 = vector.broadcast %cst_4 : f32 to vector<16x128xf32>
    %11 = arith.subf %10, %9 : vector<16x128xf32>
    %12 = math.exp %11 : vector<16x128xf32>
    %13 = math.log1p %12 : vector<16x128xf32>
    %14 = arith.addf %8, %13 : vector<16x128xf32>
    %c0_5 = arith.constant 0 : index
    %c0_6 = arith.constant 0 : index
    %15 = vector.load %arg5[%c0_5, %c0_6] : memref<8x128xf32, #tpu.memory_space<vmem>>, vector<8x128xf32>
    %16 = vector.shape_cast %14 : vector<16x128xf32> to vector<2x8x128xf32>
    %cst_7 = arith.constant dense<0.000000e+00> : vector<8x128xf32>
    %17 = vector.multi_reduction <add>, %16, %cst_7 [0] : vector<2x8x128xf32> to vector<8x128xf32>
    %18 = arith.addf %15, %17 : vector<8x128xf32>
    %c0_8 = arith.constant 0 : index
    %c0_9 = arith.constant 0 : index
    %19 = vector.load %arg5[%c0_8, %c0_9] : memref<8x128xf32, #tpu.memory_space<vmem>>, vector<8x128xf32>
    tpu.vector_store %arg5[%c0_8, %c0_9], %18 {strides = array<i32>} : memref<8x128xf32, #tpu.memory_space<vmem>>, vector<8x128xf32>,
    %c0_i32_10 = arith.constant 0 : i32
    %20 = arith.cmpi eq, %arg1, %c0_i32_10 : i32
    %21 = arith.extui %20 : i1 to i32
    %c0_i32_11 = arith.constant 0 : i32
    %22 = arith.cmpi ne, %21, %c0_i32_11 : i32
    scf.if %22 {
      %c0_12 = arith.constant 0 : index
      %c0_13 = arith.constant 0 : index
      %23 = vector.load %arg5[%c0_12, %c0_13] : memref<8x128xf32, #tpu.memory_space<vmem>>, vector<8x128xf32>
      %24 = vector.shape_cast %23 : vector<8x128xf32> to vector<1x8x128xf32>
      %cst_14 = arith.constant dense<0.000000e+00> : vector<1xf32>
      %25 = vector.multi_reduction <add>, %24, %cst_14 [1, 2] : vector<1x8x128xf32> to vector<1xf32>
      %26 = vector.shape_cast %25 : vector<1xf32> to vector<1x1x1xf32>
      %27 = vector.extract %26[0, 0, 0] : f32 from vector<1x1x1xf32>
      %28 = vector.broadcast %27 : f32 to vector<1x1x1xf32>
      %c0_15 = arith.constant 0 : index
      %c0_16 = arith.constant 0 : index
      %c0_17 = arith.constant 0 : index
      %29 = vector.load %arg4[%c0_15, %c0_16, %c0_17] : memref<1x1x1xf32, #tpu.memory_space<vmem>>, vector<1x1x1xf32>
      tpu.vector_store %arg4[%c0_15, %c0_16, %c0_17], %28 {strides = array<i32>} : memref<1x1x1xf32, #tpu.memory_space<vmem>>, vector<1x1x1xf32>,
    } else {
    }
    return
  }
  func.func @transform_0(%arg0: i32, %arg1: i32) -> (i32, i32) {
    %c1_i32 = arith.constant 1 : i32
    %0 = arith.muli %arg0, %c1_i32 : i32
    %1 = arith.addi %0, %arg1 : i32
    %c0_i32 = arith.constant 0 : i32
    %c0_i32_0 = arith.constant 0 : i32
    return %1, %c0_i32 : i32, i32
  }
  func.func @transform_1(%arg0: i32, %arg1: i32) -> (i32, i32) {
    %c1_i32 = arith.constant 1 : i32
    %0 = arith.muli %arg0, %c1_i32 : i32
    %1 = arith.addi %0, %arg1 : i32
    %c0_i32 = arith.constant 0 : i32
    %c0_i32_0 = arith.constant 0 : i32
    return %1, %c0_i32 : i32, i32
  }
  func.func @transform_2(%arg0: i32, %arg1: i32) -> (i32, i32, i32) {
    %c0_i32 = arith.constant 0 : i32
    %c0_i32_0 = arith.constant 0 : i32
    %c0_i32_1 = arith.constant 0 : i32
    return %arg0, %c0_i32, %c0_i32_0 : i32, i32, i32
  }
}

</mosaic_0001>

<llo_original>
// kernel: tpu_custom_call.1
$region0: #{tpu_custom_call.1}
  #allocation0 [shape = 'u32[]', space=smem, size = 0x4, offset = 0x4, fixed_abs, tag = 'smem constant byte address 0x4 - core index']
  #allocation1 [shape = 'u32[72,128]{1,0:T(1,128)}', space=vmem, size = 0x9000, scoped, tag = 'internal scratch']
  #allocation2 [shape = 'f32[8,128]{1,0:T(8,128)}', space=vmem, size = 0x1000, scoped, tag = 'scratch operand']
  %s0 = inlined_call_operand.hbm [shape: f32[16,128], index: 0, kind: input, shape index: {}]
  %s1 = inlined_call_operand.hbm [shape: f32[16,128], index: 1, kind: input, shape index: {}]
  %s2 = inlined_call_operand.hbm [shape: f32[1,1,1], index: 2, kind: output, shape index: {}]
  %s3 = sld [smem:[#allocation0]]
  $region34: #{tpu_custom_call.1} parent=0
    _
  %s5 = ssub.s32 1, %s3
  %s6 = scalar_select 0, %s5, %s3
  $region1: #{tpu_custom_call.1} parent=0
    #allocation3 [shape = 'u8[8192]{0}', space=vmem, size = 0x2000, scoped, tag = 'input window, operand 0, single buffered']
    #allocation4 [shape = 's32[1]{0}', space=sflag, size = 0x4, scoped, tag = 'scoped memory for tpu_custom_call.1']
    #allocation5 [shape = 's32[1]{0}', space=sflag, size = 0x4, scoped, tag = 'scoped memory for tpu_custom_call.1']
    #allocation6 [shape = 'u8[8192]{0}', space=vmem, size = 0x2000, scoped, tag = 'input window, operand 1, single buffered']
    #allocation7 [shape = 's32[1]{0}', space=sflag, size = 0x4, scoped, tag = 'scoped memory for tpu_custom_call.1']
    #allocation8 [shape = 'u8[512]{0}', space=vmem, size = 0x400, scoped, tag = 'output window, operand 0, single buffered']
    %7 = vsyncpa [#allocation4], 0
    %8 = vsyncpa [#allocation7], 0
    %9 = vsyncpa [#allocation5], 0
    // Predicated region
    $region2: #{tpu_custom_call.1} parent=1 // pred_check
      _
    $region3: #{tpu_custom_call.1} parent=1 // pred_check_branch
      %11 = sbr.rel (0) target = $region5
    $region4: #{tpu_custom_call.1} parent=1 // pred_region
      %s12 = sadd.s32 0, 0
      %s13 = smul.u32 2, %s12
      %15 = vsyncadd [#allocation4], 0
      %s16 = smul.addr %s13, 8
      %s17 = scalar_lea.hbm %s0, %s16
      %s18 = sshll.u32 %s17, 4
      %s19 = int_to_ptr.hbm [resolvable:$true] %s18
      %s20 = sshll.u32 [#allocation3], 4
      %s21 = int_to_ptr.vmem [resolvable:$true] %s20
      %26 = dma.hbm_to_vmem [thread:$0]  %s19, 256, %s21, [#allocation4], 128, 128, 8
    $region5: #{tpu_custom_call.1} parent=1 // pred_fallthru
      _
    // Predicated region
    $region6: #{tpu_custom_call.1} parent=1 // pred_check
      _
    $region7: #{tpu_custom_call.1} parent=1 // pred_check_branch
      %28 = sbr.rel (0) target = $region9
    $region8: #{tpu_custom_call.1} parent=1 // pred_region
      %s29 = sadd.s32 0, 0
      %s30 = smul.u32 2, %s29
      %32 = vsyncadd [#allocation7], 0
      %s33 = smul.addr %s30, 8
      %s34 = scalar_lea.hbm %s1, %s33
      %s35 = sshll.u32 %s34, 4
      %s36 = int_to_ptr.hbm [resolvable:$true] %s35
      %s37 = sshll.u32 [#allocation6], 4
      %s38 = int_to_ptr.vmem [resolvable:$true] %s37
      %43 = dma.hbm_to_vmem [thread:$0]  %s36, 256, %s38, [#allocation7], 128, 128, 8
    $region9: #{tpu_custom_call.1} parent=1 // pred_fallthru
      _
    // Predicated region
    $region10: #{tpu_custom_call.1} parent=1 // pred_check
      _
    $region11: #{tpu_custom_call.1} parent=1 // pred_check_branch
      %45 = sbr.rel (0) target = $region13
    $region12: #{tpu_custom_call.1} parent=1 // pred_region
      %47 = dma.done [#allocation4], 256
    $region13: #{tpu_custom_call.1} parent=1 // pred_fallthru
      _
    // Predicated region
    $region14: #{tpu_custom_call.1} parent=1 // pred_check
      _
    $region15: #{tpu_custom_call.1} parent=1 // pred_check_branch
      %49 = sbr.rel (0) target = $region17
    $region16: #{tpu_custom_call.1} parent=1 // pred_region
      %51 = dma.done [#allocation7], 256
    $region17: #{tpu_custom_call.1} parent=1 // pred_fallthru
      _
    %s52 = sadd.s32 0, 0
    %s53 = smul.u32 2, %s52
    %s54 = sadd.s32 0, 0
    %s55 = smul.u32 2, %s54
    %p56 = scmp.eq.s32.totalorder 0, 0
    // Predicated region
    $region18: #{tpu_custom_call.1} parent=1 // pred_check
      %p57 = pneg %p56
    $region19: #{tpu_custom_call.1} parent=1 // pred_check_branch
      %59 = sbr.rel (%p57) target = $region21
    $region20: #{tpu_custom_call.1} parent=1 // pred_region
      %60 = vst [vmem:[#allocation2] sm:$0xff] 0.0
    $region21: #{tpu_custom_call.1} parent=1 // pred_fallthru
      _
    %v61 = vld [vmem:[#allocation3] sm:$0xff]
    %v62 = vld [vmem:[#allocation3 + $0x8] sm:$0xff]
    %v63 = vld [vmem:[#allocation6] sm:$0xff]
    %v64 = vld [vmem:[#allocation6 + $0x8] sm:$0xff]
    %v65 = vmax.f32 %v61, 0.0
    %v66 = vmax.f32 %v62, 0.0
    %v67 = vmul.f32 %v61, %v63
    %v68 = vmul.f32 %v62, %v64
    %v69 = vsub.f32 %v65, %v67
    %v70 = vsub.f32 %v66, %v68
    %v71 = vand.u32 2147483647, %v61
    %v72 = vand.u32 2147483647, %v62
    %v73 = vsub.f32 0.0, %v71
    %v74 = vsub.f32 0.0, %v72
    %v75 = vmul.f32 %v73, 1.442695
    %v76 = vpow.pop %v75
    %v77 = vmul.f32 %v74, 1.442695
    %v78 = vpow.pop %v77
    %v79 = vadd.f32 %v76, 1.0
    %v80 = vlog2.pop %v79
    %v81 = vmul.f32 %v80, 0.6931472
    %v82 = vmul.f32 -0.5, %v76
    %v83 = vadd.f32 %v82, 1.0
    %v84 = vmul.f32 %v83, %v76
    %v85 = vand.u32 2147483647, %v76
    %vm86 = vcmp.lt.f32.partialorder %v85, 0.0004427343
    %v87 = vsel %vm86, %v84, %v81
    %v88 = vadd.f32 %v78, 1.0
    %v89 = vlog2.pop %v88
    %v90 = vmul.f32 %v89, 0.6931472
    %v91 = vmul.f32 -0.5, %v78
    %v92 = vadd.f32 %v91, 1.0
    %v93 = vmul.f32 %v92, %v78
    %v94 = vand.u32 2147483647, %v78
    %vm95 = vcmp.lt.f32.partialorder %v94, 0.0004427343
    %v96 = vsel %vm95, %v93, %v90
    %v97 = vadd.f32 %v69, %v87
    %v98 = vadd.f32 %v70, %v96
    %v99 = vld [vmem:[#allocation2] sm:$0xff]
    %v100 = vadd.f32 %v97, %v98
    %v101 = vadd.f32 %v99, %v100
    %102 = vst [vmem:[#allocation2] sm:$0xff] %v101
    // Predicated region
    $region22: #{tpu_custom_call.1} parent=1 // pred_check
      %p103 = pneg %p56
    $region23: #{tpu_custom_call.1} parent=1 // pred_check_branch
      %105 = sbr.rel (%p103) target = $region25
    $region24: #{tpu_custom_call.1} parent=1 // pred_region
      %v106 = vld [vmem:[#allocation2] sm:$0xff]
      %107 = vadd.xlane.f32.xlu0 %v106
      %v108 = vpop.xlane.xlu0 %107
      %v109 = vrot.slane %v108, 4
      %v110 = vadd.f32 %v108, %v109
      %v111 = vrot.slane %v110, 2
      %v112 = vadd.f32 %v110, %v111
      %v113 = vrot.slane %v112, 1
      %v114 = vadd.f32 %v112, %v113
      %s115 = vtos %v114
      %v116 = vstv %s115
      %vm117 = vcmask 0
      %118 = vst.msk [vmem:[#allocation8] sm:$0x1] %vm117, %v116
    $region25: #{tpu_custom_call.1} parent=1 // pred_fallthru
      _
    // Predicated region
    $region26: #{tpu_custom_call.1} parent=1 // pred_check
      _
    $region27: #{tpu_custom_call.1} parent=1 // pred_check_branch
      %120 = sbr.rel (0) target = $region29
    $region28: #{tpu_custom_call.1} parent=1 // pred_region
      %122 = vsyncadd [#allocation5], 0
      %s124 = sshll.u32 [#allocation8], 4
      %s125 = int_to_ptr.vmem [resolvable:$true] %s124
      %s126 = sshll.u32 %s2, 4
      %s127 = int_to_ptr.hbm [resolvable:$true] %s126
      %129 = dma.vmem_to_hbm [thread:$0]  %s125, 16, %s127, [#allocation5]
    $region29: #{tpu_custom_call.1} parent=1 // pred_fallthru
      _
    // Predicated region
    $region30: #{tpu_custom_call.1} parent=1 // pred_check
      _
    $region31: #{tpu_custom_call.1} parent=1 // pred_check_branch
      %131 = sbr.rel (0) target = $region33
    $region32: #{tpu_custom_call.1} parent=1 // pred_region
      %133 = dma.done [#allocation5], 16
    $region33: #{tpu_custom_call.1} parent=1 // pred_fallthru
      _
    %134 = vsyncpa [#allocation4], 1
    %135 = vsyncpa [#allocation7], 1
    %136 = vsyncpa [#allocation5], 1

</llo_original>
